<compile_context>
chip_gen: v7x
topology: tpu7x:2x2x1
jax: 0.10.0
libtpu: 0.0.40
codegen_flags: <defaults>
</compile_context>

<pallas_src>
import functools
import math

import jax
import jax.numpy as jnp
from jax import lax
from jax.experimental import pallas as pl
from jax.experimental.pallas import tpu as pltpu


def _attn_kernel(x_q_ref, x_kv_ref, wq_ref, wkv_ref, bq_ref, bkv_ref,
                 o_ref, k_vmem, v_vmem, *, hidden_dim: int):
    H = hidden_dim
    qi = pl.program_id(1)

    # ---- K/V projection: once per batch element, resident across q-tiles ----
    @pl.when(qi == 0)
    def _():
        x_kv = x_kv_ref[0]                                         # (S, H) bf16
        kv = jnp.dot(x_kv, wkv_ref[...],
                     preferred_element_type=jnp.float32)           # (S, 2H) f32
        kv = kv + bkv_ref[...]                                     # f32 bias add
        # Static lane slices; free when H % 128 == 0 (production shapes).
        k_vmem[...] = kv[:, :H].astype(k_vmem.dtype)
        v_vmem[...] = kv[:, H:].astype(v_vmem.dtype)

    # ---- Q projection for this query tile (scale pre-folded into Wq/bq) ----
    x_q = x_q_ref[0]                                               # (TQ, H) bf16
    q = jnp.dot(x_q, wq_ref[...],
                preferred_element_type=jnp.float32) + bq_ref[...]  # (TQ, H) f32
    q = q.astype(jnp.bfloat16)

    # ---- scores = q @ k^T without materializing k.T ----
    scores = lax.dot_general(
        q, k_vmem[...], (((1,), (1,)), ((), ())),
        preferred_element_type=jnp.float32)                        # (TQ, S) f32

    # ---- numerically-stable softmax in f32 ----
    m = jnp.max(scores, axis=-1, keepdims=True)
    p = jnp.exp(scores - m)
    denom = jnp.sum(p, axis=-1, keepdims=True)
    attn = (p * pl.reciprocal(denom, approx=True)).astype(jnp.bfloat16)

    # ---- output ----
    out = jnp.dot(attn, v_vmem[...], preferred_element_type=jnp.float32)
    o_ref[0] = out.astype(o_ref.dtype)


def simplified_attention(x, wq, bq, wk, bk, wv, bv):
    """x: (B, S, H) float32.  Weights PyTorch-style (out, in); biases (H,)."""
    B, S, H = x.shape
    scale = 1.0 / math.sqrt(float(H))

    # Fold the softmax scale into the Q projection (host-side constants).
    wq_t = (wq.T * scale).astype(jnp.bfloat16)                       # (H, H)
    bq2 = (bq * scale).reshape(1, H).astype(jnp.float32)

    # Fuse K|V into one wide projection.
    wkv_t = jnp.concatenate([wk.T, wv.T], axis=1).astype(jnp.bfloat16)  # (H, 2H)
    bkv2 = jnp.concatenate([bk, bv]).reshape(1, 2 * H).astype(jnp.float32)

    x_bf16 = x.astype(jnp.bfloat16)

    # Query-tile size: largest of {512, 256, 128} that divides S, else full S.
    TQ = S
    for cand in (512, 256, 128):
        if S % cand == 0:
            TQ = cand
            break
    num_q = S // TQ

    kernel = functools.partial(_attn_kernel, hidden_dim=H)

    return pl.pallas_call(
        kernel,
        out_shape=jax.ShapeDtypeStruct((B, S, H), jnp.float32),
        grid_spec=pltpu.PrefetchScalarGridSpec(
            num_scalar_prefetch=0,
            grid=(B, num_q),
            in_specs=[
                pl.BlockSpec((1, TQ, H), lambda b, qi: (b, qi, 0)),   # x (query tile)
                pl.BlockSpec((1, S, H), lambda b, qi: (b, 0, 0)),     # x (full, K/V)
                pl.BlockSpec((H, H), lambda b, qi: (0, 0)),           # Wq^T * scale
                pl.BlockSpec((H, 2 * H), lambda b, qi: (0, 0)),       # [Wk^T | Wv^T]
                pl.BlockSpec((1, H), lambda b, qi: (0, 0)),           # bq * scale
                pl.BlockSpec((1, 2 * H), lambda b, qi: (0, 0)),       # [bk | bv]
            ],
            out_specs=pl.BlockSpec((1, TQ, H), lambda b, qi: (b, qi, 0)),
            scratch_shapes=[
                pltpu.VMEM((S, H), jnp.bfloat16),   # K (resident per batch elem)
                pltpu.VMEM((S, H), jnp.bfloat16),   # V
            ],
        ),
        compiler_params=pltpu.CompilerParams(
            dimension_semantics=("parallel", "arbitrary")),
    )(x_bf16, x_bf16, wq_t, wkv_t, bq2, bkv2)


def _reference(x, wq, bq, wk, bk, wv, bv):
    """Pure-JAX f32 reference mirroring the PyTorch module."""
    H = x.shape[-1]
    q = x @ wq.T + bq
    k = x @ wk.T + bk
    v = x @ wv.T + bv
    scores = jnp.einsum("bsh,bth->bst", q, k) / math.sqrt(float(H))
    attn = jax.nn.softmax(scores, axis=-1)
    return jnp.einsum("bst,bth->bsh", attn, v)


if __name__ == "__main__":
    B, S, H = 2, 8, 32  # batch, seq, hidden_dim

    key = jax.random.PRNGKey(0)
    kx, kq, kbq, kk, kbk, kv, kbv = jax.random.split(key, 7)

    x = jax.random.normal(kx, (B, S, H), dtype=jnp.float32)

    # nn.Linear-shaped params: W is (out, in) = (H, H), b is (H,)
    bound = 1.0 / math.sqrt(H)
    wq = jax.random.uniform(kq, (H, H), jnp.float32, -bound, bound)
    bq = jax.random.uniform(kbq, (H,), jnp.float32, -bound, bound)
    wk = jax.random.uniform(kk, (H, H), jnp.float32, -bound, bound)
    bk = jax.random.uniform(kbk, (H,), jnp.float32, -bound, bound)
    wv = jax.random.uniform(kv, (H, H), jnp.float32, -bound, bound)
    bv = jax.random.uniform(kbv, (H,), jnp.float32, -bound, bound)

    out = simplified_attention(x, wq, bq, wk, bk, wv, bv)
    out = jax.block_until_ready(out)

    ref = _reference(x, wq, bq, wk, bk, wv, bv)
    assert out.shape == (B, S, H)
    # Tolerance relaxed vs. pure-f32 because MXU operands are bf16 and the
    # softmax denominator uses the approximate EUP reciprocal.
    assert jnp.allclose(out, ref, atol=3e-2, rtol=3e-2), "mismatch vs reference"

    print("KERNEL_OK")
</pallas_src>

<mosaic_0001>
module attributes {stable_mosaic.version = 11 : i64} {
  func.func @_attn_kernel(%arg0: i32, %arg1: i32, %arg2: memref<1x8x32xbf16, #tpu.memory_space<vmem>>, %arg3: memref<1x8x32xbf16, #tpu.memory_space<vmem>>, %arg4: memref<32x32xbf16, #tpu.memory_space<vmem>>, %arg5: memref<32x64xbf16, #tpu.memory_space<vmem>>, %arg6: memref<1x32xf32, #tpu.memory_space<vmem>>, %arg7: memref<1x64xf32, #tpu.memory_space<vmem>>, %arg8: memref<1x8x32xf32, #tpu.memory_space<vmem>>, %arg9: memref<8x32xbf16, #tpu.memory_space<vmem>>, %arg10: memref<8x32xbf16, #tpu.memory_space<vmem>>) attributes {dimension_semantics = [#tpu.dimension_semantics<parallel>, #tpu.dimension_semantics<arbitrary>], iteration_bounds = array<i64: 2, 1>, scalar_prefetch = 0 : i64, scratch_operands = 2 : i64, tpu.core_type = #tpu.core_type<tc>, window_params = [{transform_indices = @transform_0, window_bounds = array<i64: 1, 8, 32>}, {transform_indices = @transform_1, window_bounds = array<i64: 1, 8, 32>}, {pipeline_mode = #tpu.pipeline_mode<synchronous>, transform_indices = @transform_2, window_bounds = array<i64: 32, 32>}, {pipeline_mode = #tpu.pipeline_mode<synchronous>, transform_indices = @transform_3, window_bounds = array<i64: 32, 64>}, {pipeline_mode = #tpu.pipeline_mode<synchronous>, transform_indices = @transform_4, window_bounds = array<i64: 1, 32>}, {pipeline_mode = #tpu.pipeline_mode<synchronous>, transform_indices = @transform_5, window_bounds = array<i64: 1, 64>}, {transform_indices = @transform_6, window_bounds = array<i64: 1, 8, 32>}]} {
    %c0_i32 = arith.constant 0 : i32
    %0 = arith.cmpi eq, %arg1, %c0_i32 : i32
    %1 = arith.extui %0 : i1 to i32
    %c0_i32_0 = arith.constant 0 : i32
    %2 = arith.cmpi ne, %1, %c0_i32_0 : i32
    scf.if %2 {
      %c0_18 = arith.constant 0 : index
      %c0_19 = arith.constant 0 : index
      %c0_20 = arith.constant 0 : index
      %29 = vector.load %arg3[%c0_18, %c0_19, %c0_20] : memref<1x8x32xbf16, #tpu.memory_space<vmem>>, vector<1x8x32xbf16>
      %30 = vector.shape_cast %29 : vector<1x8x32xbf16> to vector<8x32xbf16>
      %c0_21 = arith.constant 0 : index
      %c0_22 = arith.constant 0 : index
      %31 = vector.load %arg5[%c0_21, %c0_22] : memref<32x64xbf16, #tpu.memory_space<vmem>>, vector<32x64xbf16>
      %cst_23 = arith.constant dense<0.000000e+00> : vector<8x64xf32>
      %32 = tpu.matmul %30, %31, %cst_23 {dimension_numbers = #tpu.dot_dimension_numbers<[1], [0], [0], [1], [0, 0, 1, 1], [], []>} : vector<8x32xbf16>, vector<32x64xbf16>, vector<8x64xf32> -> vector<8x64xf32>
      %c0_24 = arith.constant 0 : index
      %c0_25 = arith.constant 0 : index
      %33 = vector.load %arg7[%c0_24, %c0_25] : memref<1x64xf32, #tpu.memory_space<vmem>>, vector<1x64xf32>
      %34 = vector.broadcast %33 : vector<1x64xf32> to vector<8x64xf32>
      %35 = arith.addf %32, %34 : vector<8x64xf32>
      %36 = vector.extract_strided_slice %35 {offsets = [0, 0], sizes = [8, 32], strides = [1, 1]} : vector<8x64xf32> to vector<8x32xf32>
      %37 = arith.truncf %36 : vector<8x32xf32> to vector<8x32xbf16>
      %c0_26 = arith.constant 0 : index
      %c0_27 = arith.constant 0 : index
      %38 = vector.load %arg9[%c0_26, %c0_27] : memref<8x32xbf16, #tpu.memory_space<vmem>>, vector<8x32xbf16>
      tpu.vector_store %arg9[%c0_26, %c0_27], %37 {strides = array<i32>} : memref<8x32xbf16, #tpu.memory_space<vmem>>, vector<8x32xbf16>,
      %39 = vector.extract_strided_slice %35 {offsets = [0, 32], sizes = [8, 32], strides = [1, 1]} : vector<8x64xf32> to vector<8x32xf32>
      %40 = arith.truncf %39 : vector<8x32xf32> to vector<8x32xbf16>
      %c0_28 = arith.constant 0 : index
      %c0_29 = arith.constant 0 : index
      %41 = vector.load %arg10[%c0_28, %c0_29] : memref<8x32xbf16, #tpu.memory_space<vmem>>, vector<8x32xbf16>
      tpu.vector_store %arg10[%c0_28, %c0_29], %40 {strides = array<i32>} : memref<8x32xbf16, #tpu.memory_space<vmem>>, vector<8x32xbf16>,
    } else {
    }
    %c0 = arith.constant 0 : index
    %c0_1 = arith.constant 0 : index
    %c0_2 = arith.constant 0 : index
    %3 = vector.load %arg2[%c0, %c0_1, %c0_2] : memref<1x8x32xbf16, #tpu.memory_space<vmem>>, vector<1x8x32xbf16>
    %4 = vector.shape_cast %3 : vector<1x8x32xbf16> to vector<8x32xbf16>
    %c0_3 = arith.constant 0 : index
    %c0_4 = arith.constant 0 : index
    %5 = vector.load %arg4[%c0_3, %c0_4] : memref<32x32xbf16, #tpu.memory_space<vmem>>, vector<32x32xbf16>
    %cst = arith.constant dense<0.000000e+00> : vector<8x32xf32>
    %6 = tpu.matmul %4, %5, %cst {dimension_numbers = #tpu.dot_dimension_numbers<[1], [0], [0], [1], [0, 0, 1, 1], [], []>} : vector<8x32xbf16>, vector<32x32xbf16>, vector<8x32xf32> -> vector<8x32xf32>
    %c0_5 = arith.constant 0 : index
    %c0_6 = arith.constant 0 : index
    %7 = vector.load %arg6[%c0_5, %c0_6] : memref<1x32xf32, #tpu.memory_space<vmem>>, vector<1x32xf32>
    %8 = vector.broadcast %7 : vector<1x32xf32> to vector<8x32xf32>
    %9 = arith.addf %6, %8 : vector<8x32xf32>
    %10 = arith.truncf %9 : vector<8x32xf32> to vector<8x32xbf16>
    %c0_7 = arith.constant 0 : index
    %c0_8 = arith.constant 0 : index
    %11 = vector.load %arg9[%c0_7, %c0_8] : memref<8x32xbf16, #tpu.memory_space<vmem>>, vector<8x32xbf16>
    %cst_9 = arith.constant dense<0.000000e+00> : vector<8x8xf32>
    %12 = tpu.matmul %10, %11, %cst_9 {dimension_numbers = #tpu.dot_dimension_numbers<[1], [1], [0], [0], [0, 0, 1, 0], [], []>} : vector<8x32xbf16>, vector<8x32xbf16>, vector<8x8xf32> -> vector<8x8xf32>
    %cst_10 = arith.constant dense<0xFF800000> : vector<8xf32>
    %13 = vector.multi_reduction <maximumf>, %12, %cst_10 [1] : vector<8x8xf32> to vector<8xf32>
    %14 = vector.shape_cast %13 : vector<8xf32> to vector<8x1xf32>
    %15 = vector.broadcast %14 : vector<8x1xf32> to vector<8x8xf32>
    %16 = arith.subf %12, %15 : vector<8x8xf32>
    %17 = math.exp %16 : vector<8x8xf32>
    %cst_11 = arith.constant dense<0.000000e+00> : vector<8xf32>
    %18 = vector.multi_reduction <add>, %17, %cst_11 [1] : vector<8x8xf32> to vector<8xf32>
    %19 = vector.shape_cast %18 : vector<8xf32> to vector<8x1xf32>
    %20 = tpu.reciprocal %19 {approx = true} : vector<8x1xf32> -> vector<8x1xf32>
    %21 = vector.broadcast %20 : vector<8x1xf32> to vector<8x8xf32>
    %22 = arith.mulf %17, %21 : vector<8x8xf32>
    %23 = arith.truncf %22 : vector<8x8xf32> to vector<8x8xbf16>
    %c0_12 = arith.constant 0 : index
    %c0_13 = arith.constant 0 : index
    %24 = vector.load %arg10[%c0_12, %c0_13] : memref<8x32xbf16, #tpu.memory_space<vmem>>, vector<8x32xbf16>
    %cst_14 = arith.constant dense<0.000000e+00> : vector<8x32xf32>
    %25 = tpu.matmul %23, %24, %cst_14 {dimension_numbers = #tpu.dot_dimension_numbers<[1], [0], [0], [1], [0, 0, 1, 1], [], []>} : vector<8x8xbf16>, vector<8x32xbf16>, vector<8x32xf32> -> vector<8x32xf32>
    %c0_15 = arith.constant 0 : index
    %c0_16 = arith.constant 0 : index
    %c0_17 = arith.constant 0 : index
    %26 = vector.load %arg8[%c0_15, %c0_16, %c0_17] : memref<1x8x32xf32, #tpu.memory_space<vmem>>, vector<1x8x32xf32>
    %27 = vector.shape_cast %26 : vector<1x8x32xf32> to vector<8x32xf32>
    %28 = vector.shape_cast %25 : vector<8x32xf32> to vector<1x8x32xf32>
    tpu.vector_store %arg8[%c0_15, %c0_16, %c0_17], %28 {strides = array<i32>} : memref<1x8x32xf32, #tpu.memory_space<vmem>>, vector<1x8x32xf32>,
    return
  }
  func.func @transform_0(%arg0: i32, %arg1: i32) -> (i32, i32, i32) {
    %c0_i32 = arith.constant 0 : i32
    %c0_i32_0 = arith.constant 0 : i32
    return %arg0, %arg1, %c0_i32 : i32, i32, i32
  }
  func.func @transform_1(%arg0: i32, %arg1: i32) -> (i32, i32, i32) {
    %c0_i32 = arith.constant 0 : i32
    %c0_i32_0 = arith.constant 0 : i32
    %c0_i32_1 = arith.constant 0 : i32
    return %arg0, %c0_i32, %c0_i32_0 : i32, i32, i32
  }
  func.func @transform_2(%arg0: i32, %arg1: i32) -> (i32, i32) {
    %c0_i32 = arith.constant 0 : i32
    %c0_i32_0 = arith.constant 0 : i32
    %c0_i32_1 = arith.constant 0 : i32
    return %c0_i32, %c0_i32_0 : i32, i32
  }
  func.func @transform_3(%arg0: i32, %arg1: i32) -> (i32, i32) {
    %c0_i32 = arith.constant 0 : i32
    %c0_i32_0 = arith.constant 0 : i32
    %c0_i32_1 = arith.constant 0 : i32
    return %c0_i32, %c0_i32_0 : i32, i32
  }
  func.func @transform_4(%arg0: i32, %arg1: i32) -> (i32, i32) {
    %c0_i32 = arith.constant 0 : i32
    %c0_i32_0 = arith.constant 0 : i32
    %c0_i32_1 = arith.constant 0 : i32
    return %c0_i32, %c0_i32_0 : i32, i32
  }
  func.func @transform_5(%arg0: i32, %arg1: i32) -> (i32, i32) {
    %c0_i32 = arith.constant 0 : i32
    %c0_i32_0 = arith.constant 0 : i32
    %c0_i32_1 = arith.constant 0 : i32
    return %c0_i32, %c0_i32_0 : i32, i32
  }
  func.func @transform_6(%arg0: i32, %arg1: i32) -> (i32, i32, i32) {
    %c0_i32 = arith.constant 0 : i32
    %c0_i32_0 = arith.constant 0 : i32
    return %arg0, %arg1, %c0_i32 : i32, i32, i32
  }
}

</mosaic_0001>

<llo_original>
// kernel: tpu_custom_call.1
$region0: #{tpu_custom_call.1}
  #allocation0 [shape = 'u32[]', space=smem, size = 0x4, offset = 0x4, fixed_abs, tag = 'smem constant byte address 0x4 - core index']
  #allocation1 [shape = 'u32[144,128]{1,0:T(1,128)}', space=vmem, size = 0x12000, scoped, tag = 'internal scratch']
  #allocation2 [shape = 'bf16[8,32]{1,0:T(8,128)(2,1)}', space=vmem, size = 0x800, scoped, tag = 'scratch operand']
  #allocation3 [shape = 'bf16[8,32]{1,0:T(8,128)(2,1)}', space=vmem, size = 0x800, scoped, tag = 'scratch operand']
  %s0 = inlined_call_operand.hbm [shape: bf16[2,8,32], index: 0, kind: input, shape index: {}]
  %s1 = inlined_call_operand.hbm [shape: bf16[2,8,32], index: 1, kind: input, shape index: {}]
  %s2 = inlined_call_operand.hbm [shape: bf16[32,32], index: 2, kind: input, shape index: {}]
  %s3 = inlined_call_operand.hbm [shape: bf16[32,64], index: 3, kind: input, shape index: {}]
  %s4 = inlined_call_operand.vmem [shape: f32[1,32], index: 4, kind: input, shape index: {}]
  %s5 = inlined_call_operand.vmem [shape: f32[1,64], index: 5, kind: input, shape index: {}]
  %s6 = inlined_call_operand.hbm [shape: f32[2,8,32], index: 6, kind: output, shape index: {}]
  %s7 = sld [smem:[#allocation0]]
  $region77: #{tpu_custom_call.1} parent=0
    _
  %s9 = ssub.s32 1, %s7
  %s10 = scalar_select 0, %s9, %s7
  $region1: #{tpu_custom_call.1} parent=0
    #allocation4 [shape = 'u8[4096]{0}', space=vmem, size = 0x1000, scoped, tag = 'input window, operand 0']
    #allocation5 [shape = 's32[2]{0}', space=sflag, size = 0x8, scoped, tag = 'scoped memory for tpu_custom_call.1']
    #allocation6 [shape = 's32[2]{0}', space=sflag, size = 0x8, scoped, tag = 'scoped memory for tpu_custom_call.1']
    #allocation7 [shape = 'u8[4096]{0}', space=vmem, size = 0x1000, scoped, tag = 'input window, operand 1']
    #allocation8 [shape = 's32[2]{0}', space=sflag, size = 0x8, scoped, tag = 'scoped memory for tpu_custom_call.1']
    #allocation9 [shape = 'u8[8192]{0}', space=vmem, size = 0x2000, scoped, tag = 'input window, operand 2, single buffered']
    #allocation10 [shape = 'u8[8192]{0}', space=vmem, size = 0x2000, scoped, tag = 'input window, operand 3, single buffered']
    #allocation11 [shape = 's32[1]{0}', space=sflag, size = 0x4, scoped, tag = 'scoped memory for tpu_custom_call.1']
    #allocation12 [shape = 'u8[8192]{0}', space=vmem, size = 0x2000, scoped, tag = 'output window, operand 0']
    %11 = vsyncpa [#allocation5], 0
    %s12 = scalar_lea.sflag [#allocation5], 1
    %13 = vsyncpa %s12, 0
    %14 = vsyncpa [#allocation8], 0
    %s15 = scalar_lea.sflag [#allocation8], 1
    %16 = vsyncpa %s15, 0
    %17 = vsyncpa [#allocation11], 0
    %18 = vsyncpa [#allocation6], 0
    %s19 = scalar_lea.sflag [#allocation6], 1
    %20 = vsyncpa %s19, 0
    loop: start=0, step=1, limit=4
    $region2: #{tpu_custom_call.1} parent=1 // loop_pre_header
      _
    $region3: #{tpu_custom_call.1} parent=1 // loop_header
      %s22 = sphi 0, %s26
      %p23 = scmp.ge.s32.totalorder %s22, 4
      %s29 = sphi 0, %s41
      %s30 = sphi 0, %s37
      %s31 = sphi 0, %s29
      %s32 = sphi 0, %s30
      %s33 = sphi 0, %s31
      %s34 = sphi 0, %s32
      %s46 = sphi 0, %s48
      %s49 = sphi 0, %s46
      %s50 = sphi 0, %s49
      %s66 = sphi 0, %s50
      %s72 = sphi 0, %s74
      %s75 = sphi 0, %s72
      %s76 = sphi 0, %s75
      %s92 = sphi 0, %s76
      %s96 = sphi 0, %s96
      %s98 = sphi 0, %s96
      %s99 = sphi 0, %s98
      %s113 = sphi 0, %s99
      %s117 = sphi 0, %s117
      %s119 = sphi 0, %s117
      %s120 = sphi 0, %s119
      %s134 = sphi 0, %s120
      %s138 = sphi 0, %s138
      %s140 = sphi 0, %s138
      %s141 = sphi 0, %s140
      %s155 = sphi 0, %s141
      %s159 = sphi 0, %s159
      %s161 = sphi 0, %s159
      %s162 = sphi 0, %s161
      %s176 = sphi 0, %s162
      %s184 = sphi 0, %s186
      %s187 = sphi 0, %s184
      %s188 = sphi 0, %s187
      %s204 = sphi 0, %s188
    $region4: #{tpu_custom_call.1} parent=1 // loop_header_branch
      %25 = sbr.rel (%p23) target = $region8
    $region5: #{tpu_custom_call.1} parent=1 // loop_body
      %s27 = ssub.s32 %s22, 1
      %s28 = ssub.s32 %s22, 2
      %s35 = sadd.s32 1, %s30
      %p36 = scmp.ge.s32.totalorder %s35, 1
      %s37 = scalar_select %p36, 0, %s35
      %s38 = sadd.s32 1, %s29
      %s39 = scalar_select %p36, %s38, %s29
      %p40 = scmp.ge.s32.totalorder %s39, 2
      %s41 = scalar_select %p40, 0, %s39
      %s42 = ssub.s32 %s29, %s41
      %s43 = ssub.s32 %s30, %s37
      %s44 = sor.u32 %s42, %s43
      %p45 = scmp.eq.s32.totalorder %s44, 0
      %s47 = sadd.s32 %s46, 1
      %s48 = scalar_select %p45, %s46, %s47
      %p51 = pneg %p45
      %p52 = scmp.eq.s32.totalorder %s22, 1
      %p53 = por %p51, %p52
      %p54 = scmp.ne.s32.totalorder %s46, %s49
      %p55 = scmp.eq.s32.totalorder %s22, 0
      %p56 = por %p54, %p55
      %p57 = scmp.ne.s32.totalorder %s46, %s49
      %p58 = scmp.eq.s32.totalorder %s27, 1
      %p59 = por %p57, %p58
      %p60 = scmp.ne.s32.totalorder %s49, %s50
      %p61 = scmp.eq.s32.totalorder %s27, 0
      %p62 = por %p60, %p61
      %p63 = scmp.ne.s32.totalorder %s49, %s50
      %p64 = scmp.eq.s32.totalorder %s28, 1
      %p65 = por %p63, %p64
      %p67 = scmp.ne.s32.totalorder %s50, %s66
      %p68 = scmp.eq.s32.totalorder %s28, 0
      %p69 = por %p67, %p68
      %s70 = ssub.s32 %s29, %s41
      %p71 = scmp.eq.s32.totalorder %s70, 0
      %s73 = sadd.s32 %s72, 1
      %s74 = scalar_select %p71, %s72, %s73
      %p77 = pneg %p71
      %p78 = scmp.eq.s32.totalorder %s22, 1
      %p79 = por %p77, %p78
      %p80 = scmp.ne.s32.totalorder %s72, %s75
      %p81 = scmp.eq.s32.totalorder %s22, 0
      %p82 = por %p80, %p81
      %p83 = scmp.ne.s32.totalorder %s72, %s75
      %p84 = scmp.eq.s32.totalorder %s27, 1
      %p85 = por %p83, %p84
      %p86 = scmp.ne.s32.totalorder %s75, %s76
      %p87 = scmp.eq.s32.totalorder %s27, 0
      %p88 = por %p86, %p87
      %p89 = scmp.ne.s32.totalorder %s75, %s76
      %p90 = scmp.eq.s32.totalorder %s28, 1
      %p91 = por %p89, %p90
      %p93 = scmp.ne.s32.totalorder %s76, %s92
      %p94 = scmp.eq.s32.totalorder %s28, 0
      %p95 = por %p93, %p94
      %s97 = sadd.s32 %s96, 1
      %p100 = scmp.eq.s32.totalorder %s22, 1
      %p101 = scmp.ne.s32.totalorder %s96, %s98
      %p102 = scmp.eq.s32.totalorder %s22, 0
      %p103 = por %p101, %p102
      %p104 = scmp.ne.s32.totalorder %s96, %s98
      %p105 = scmp.eq.s32.totalorder %s27, 1
      %p106 = por %p104, %p105
      %p107 = scmp.ne.s32.totalorder %s98, %s99
      %p108 = scmp.eq.s32.totalorder %s27, 0
      %p109 = por %p107, %p108
      %p110 = scmp.ne.s32.totalorder %s98, %s99
      %p111 = scmp.eq.s32.totalorder %s28, 1
      %p112 = por %p110, %p111
      %p114 = scmp.ne.s32.totalorder %s99, %s113
      %p115 = scmp.eq.s32.totalorder %s28, 0
      %p116 = por %p114, %p115
      %s118 = sadd.s32 %s117, 1
      %p121 = scmp.eq.s32.totalorder %s22, 1
      %p122 = scmp.ne.s32.totalorder %s117, %s119
      %p123 = scmp.eq.s32.totalorder %s22, 0
      %p124 = por %p122, %p123
      %p125 = scmp.ne.s32.totalorder %s117, %s119
      %p126 = scmp.eq.s32.totalorder %s27, 1
      %p127 = por %p125, %p126
      %p128 = scmp.ne.s32.totalorder %s119, %s120
      %p129 = scmp.eq.s32.totalorder %s27, 0
      %p130 = por %p128, %p129
      %p131 = scmp.ne.s32.totalorder %s119, %s120
      %p132 = scmp.eq.s32.totalorder %s28, 1
      %p133 = por %p131, %p132
      %p135 = scmp.ne.s32.totalorder %s120, %s134
      %p136 = scmp.eq.s32.totalorder %s28, 0
      %p137 = por %p135, %p136
      %s139 = sadd.s32 %s138, 1
      %p142 = scmp.eq.s32.totalorder %s22, 1
      %p143 = scmp.ne.s32.totalorder %s138, %s140
      %p144 = scmp.eq.s32.totalorder %s22, 0
      %p145 = por %p143, %p144
      %p146 = scmp.ne.s32.totalorder %s138, %s140
      %p147 = scmp.eq.s32.totalorder %s27, 1
      %p148 = por %p146, %p147
      %p149 = scmp.ne.s32.totalorder %s140, %s141
      %p150 = scmp.eq.s32.totalorder %s27, 0
      %p151 = por %p149, %p150
      %p152 = scmp.ne.s32.totalorder %s140, %s141
      %p153 = scmp.eq.s32.totalorder %s28, 1
      %p154 = por %p152, %p153
      %p156 = scmp.ne.s32.totalorder %s141, %s155
      %p157 = scmp.eq.s32.totalorder %s28, 0
      %p158 = por %p156, %p157
      %s160 = sadd.s32 %s159, 1
      %p163 = scmp.eq.s32.totalorder %s22, 1
      %p164 = scmp.ne.s32.totalorder %s159, %s161
      %p165 = scmp.eq.s32.totalorder %s22, 0
      %p166 = por %p164, %p165
      %p167 = scmp.ne.s32.totalorder %s159, %s161
      %p168 = scmp.eq.s32.totalorder %s27, 1
      %p169 = por %p167, %p168
      %p170 = scmp.ne.s32.totalorder %s161, %s162
      %p171 = scmp.eq.s32.totalorder %s27, 0
      %p172 = por %p170, %p171
      %p173 = scmp.ne.s32.totalorder %s161, %s162
      %p174 = scmp.eq.s32.totalorder %s28, 1
      %p175 = por %p173, %p174
      %p177 = scmp.ne.s32.totalorder %s162, %s176
      %p178 = scmp.eq.s32.totalorder %s28, 0
      %p179 = por %p177, %p178
      %s180 = ssub.s32 %s29, %s41
      %s181 = ssub.s32 %s30, %s37
      %s182 = sor.u32 %s180, %s181
      %p183 = scmp.eq.s32.totalorder %s182, 0
      %s185 = sadd.s32 %s184, 1
      %s186 = scalar_select %p183, %s184, %s185
      %p189 = pneg %p183
      %p190 = scmp.eq.s32.totalorder %s22, 1
      %p191 = por %p189, %p190
      %p192 = scmp.ne.s32.totalorder %s184, %s187
      %p193 = scmp.eq.s32.totalorder %s22, 0
      %p194 = por %p192, %p193
      %p195 = scmp.ne.s32.totalorder %s184, %s187
      %p196 = scmp.eq.s32.totalorder %s27, 1
      %p197 = por %p195, %p196
      %p198 = scmp.ne.s32.totalorder %s187, %s188
      %p199 = scmp.eq.s32.totalorder %s27, 0
      %p200 = por %p198, %p199
      %p201 = scmp.ne.s32.totalorder %s187, %s188
      %p202 = scmp.eq.s32.totalorder %s28, 1
      %p203 = por %p201, %p202
      %p205 = scmp.ne.s32.totalorder %s188, %s204
      %p206 = scmp.eq.s32.totalorder %s28, 0
      %p207 = por %p205, %p206
      %p208 = scmp.le.s32.totalorder 1, %s22
      %p209 = scmp.lt.s32.totalorder %s22, 3
      %p210 = pnand %p208, %p209
      %p211 = pneg %p210
      // Predicated region
      $region9: #{tpu_custom_call.1} parent=5 // pred_check
        _
      $region10: #{tpu_custom_call.1} parent=5 // pred_check_branch
        %213 = sbr.rel (%p210) target = $region12
      $region11: #{tpu_custom_call.1} parent=5 // pred_region
        %s214 = ssub.s32 %s22, 1
        // Predicated region
        $region13: #{tpu_custom_call.1} parent=11 // pred_check
          %p215 = pneg %p109
        $region14: #{tpu_custom_call.1} parent=11 // pred_check_branch
          %217 = sbr.rel (%p215) target = $region16
        $region15: #{tpu_custom_call.1} parent=11 // pred_region
          %s219 = ssub.s32 256, 256
          %220 = vsyncadd [#allocation8], %s219
          %s221 = sshll.u32 [#allocation9], 4
          %s222 = int_to_ptr.vmem [resolvable:$true] %s221
          %227 = dma.hbm_to_vmem [thread:$0]  %s2, 256, %s222, [#allocation8], 64, 64, 4
        $region16: #{tpu_custom_call.1} parent=11 // pred_fallthru
          _
        // Predicated region
        $region17: #{tpu_custom_call.1} parent=11 // pred_check
          %p228 = pneg %p130
        $region18: #{tpu_custom_call.1} parent=11 // pred_check_branch
          %230 = sbr.rel (%p228) target = $region20
        $region19: #{tpu_custom_call.1} parent=11 // pred_region
          %s232 = ssub.s32 256, 256
          %233 = vsyncadd [#allocation11], %s232
          %s234 = sshll.u32 [#allocation10], 4
          %s235 = int_to_ptr.vmem [resolvable:$true] %s234
          %240 = dma.hbm_to_vmem [thread:$0]  %s3, 256, %s235, [#allocation11], 64, 64, 4
        $region20: #{tpu_custom_call.1} parent=11 // pred_fallthru
          _
        // Predicated region
        $region21: #{tpu_custom_call.1} parent=11 // pred_check
          %p241 = pneg %p151
        $region22: #{tpu_custom_call.1} parent=11 // pred_check_branch
          %243 = sbr.rel (%p241) target = $region24
        $region23: #{tpu_custom_call.1} parent=11 // pred_region
          _
        $region24: #{tpu_custom_call.1} parent=11 // pred_fallthru
          _
        // Predicated region
        $region25: #{tpu_custom_call.1} parent=11 // pred_check
          %p244 = pneg %p172
        $region26: #{tpu_custom_call.1} parent=11 // pred_check_branch
          %246 = sbr.rel (%p244) target = $region28
        $region27: #{tpu_custom_call.1} parent=11 // pred_region
          _
        $region28: #{tpu_custom_call.1} parent=11 // pred_fallthru
          _
      $region12: #{tpu_custom_call.1} parent=5 // pred_fallthru
        _
      %p247 = scmp.lt.s32.totalorder %s22, 2
      // Predicated region
      $region29: #{tpu_custom_call.1} parent=5 // pred_check
        %p248 = pneg %p247
      $region30: #{tpu_custom_call.1} parent=5 // pred_check_branch
        %250 = sbr.rel (%p248) target = $region32
      $region31: #{tpu_custom_call.1} parent=5 // pred_region
        // Predicated region
        $region33: #{tpu_custom_call.1} parent=31 // pred_check
          %p251 = pneg %p56
        $region34: #{tpu_custom_call.1} parent=31 // pred_check_branch
          %253 = sbr.rel (%p251) target = $region36
        $region35: #{tpu_custom_call.1} parent=31 // pred_region
          %s254 = sand.u32 %s46, 1
          %s255 = scalar_lea.sflag [#allocation5], %s254
          %s256 = sand.u32 %s46, 1
          %s257 = smul.addr %s256, 4
          %s258 = scalar_lea.vmem [#allocation4], %s257
          %s260 = ssub.s32 64, 64
          %261 = vsyncadd %s255, %s260
          %s262 = sadd.s32 %s30, %s29
          %s263 = smul.addr %s262, 64
          %s264 = scalar_lea.hbm %s0, %s263
          %s266 = sshll.u32 %s258, 4
          %s267 = int_to_ptr.vmem [resolvable:$true] %s266
          %269 = dma.hbm_to_vmem [thread:$0]  %s264, 64, %s267, %s255
        $region36: #{tpu_custom_call.1} parent=31 // pred_fallthru
          _
        // Predicated region
        $region37: #{tpu_custom_call.1} parent=31 // pred_check
          %p270 = pneg %p82
        $region38: #{tpu_custom_call.1} parent=31 // pred_check_branch
          %272 = sbr.rel (%p270) target = $region40
        $region39: #{tpu_custom_call.1} parent=31 // pred_region
          %s273 = sand.u32 %s22, 1
          %s274 = scalar_lea.sflag [#allocation8], %s273
          %s275 = sand.u32 %s72, 1
          %s276 = smul.addr %s275, 4
          %s277 = scalar_lea.vmem [#allocation7], %s276
          %s279 = ssub.s32 64, 64
          %280 = vsyncadd %s274, %s279
          %s281 = smul.addr %s29, 64
          %s282 = scalar_lea.hbm %s1, %s281
          %s284 = sshll.u32 %s277, 4
          %s285 = int_to_ptr.vmem [resolvable:$true] %s284
          %287 = dma.hbm_to_vmem [thread:$0]  %s282, 64, %s285, %s274
        $region40: #{tpu_custom_call.1} parent=31 // pred_fallthru
          _
      $region32: #{tpu_custom_call.1} parent=5 // pred_fallthru
        _
      %p288 = scmp.le.s32.totalorder 1, %s22
      %p289 = scmp.lt.s32.totalorder %s22, 3
      %p290 = pnand %p288, %p289
      %p291 = pneg %p290
      // Predicated region
      $region41: #{tpu_custom_call.1} parent=5 // pred_check
        _
      $region42: #{tpu_custom_call.1} parent=5 // pred_check_branch
        %293 = sbr.rel (%p290) target = $region44
      $region43: #{tpu_custom_call.1} parent=5 // pred_region
        %s294 = ssub.s32 %s22, 1
        %s295 = sand.u32 %s49, 1
        %s296 = scalar_lea.sflag [#allocation5], %s295
        %s297 = sand.u32 %s49, 1
        %s298 = smul.addr %s297, 4
        %s299 = scalar_lea.vmem [#allocation4], %s298
        // Predicated region
        $region45: #{tpu_custom_call.1} parent=43 // pred_check
          %p300 = pneg %p62
        $region46: #{tpu_custom_call.1} parent=43 // pred_check_branch
          %302 = sbr.rel (%p300) target = $region48
        $region47: #{tpu_custom_call.1} parent=43 // pred_region
          %303 = dma.done %s296, 64
        $region48: #{tpu_custom_call.1} parent=43 // pred_fallthru
          _
        %s304 = sand.u32 %s27, 1
        %s305 = scalar_lea.sflag [#allocation8], %s304
        %s306 = sand.u32 %s75, 1
        %s307 = smul.addr %s306, 4
        %s308 = scalar_lea.vmem [#allocation7], %s307
        // Predicated region
        $region49: #{tpu_custom_call.1} parent=43 // pred_check
          %p309 = pneg %p88
        $region50: #{tpu_custom_call.1} parent=43 // pred_check_branch
          %311 = sbr.rel (%p309) target = $region52
        $region51: #{tpu_custom_call.1} parent=43 // pred_region
          %312 = dma.done %s305, 64
        $region52: #{tpu_custom_call.1} parent=43 // pred_fallthru
          _
        // Predicated region
        $region53: #{tpu_custom_call.1} parent=43 // pred_check
          %p313 = pneg %p109
        $region54: #{tpu_custom_call.1} parent=43 // pred_check_branch
          %315 = sbr.rel (%p313) target = $region56
        $region55: #{tpu_custom_call.1} parent=43 // pred_region
          %316 = dma.done [#allocation8], 256
        $region56: #{tpu_custom_call.1} parent=43 // pred_fallthru
          _
        // Predicated region
        $region57: #{tpu_custom_call.1} parent=43 // pred_check
          %p317 = pneg %p130
        $region58: #{tpu_custom_call.1} parent=43 // pred_check_branch
          %319 = sbr.rel (%p317) target = $region60
        $region59: #{tpu_custom_call.1} parent=43 // pred_region
          %320 = dma.done [#allocation11], 256
        $region60: #{tpu_custom_call.1} parent=43 // pred_fallthru
          _
        %s321 = sand.u32 %s49, 1
        %s322 = scalar_lea.sflag [#allocation5], %s321
        %s323 = sand.u32 %s49, 1
        %s324 = smul.addr %s323, 4
        %s325 = scalar_lea.vmem [#allocation4], %s324
        %p326 = pneg %p62
        %p327 = pneg %p59
        %s328 = sand.u32 %s27, 1
        %s329 = scalar_lea.sflag [#allocation8], %s328
        %s330 = sand.u32 %s75, 1
        %s331 = smul.addr %s330, 4
        %s332 = scalar_lea.vmem [#allocation7], %s331
        %p333 = pneg %p88
        %p334 = pneg %p85
        %p335 = pneg %p109
        %p336 = pneg %p106
        %p337 = pneg %p130
        %p338 = pneg %p127
        %p339 = pneg %p151
        %p340 = pneg %p148
        %p341 = pneg %p172
        %p342 = pneg %p169
        %p343 = pneg %p200
        %p344 = pneg %p197
        %s345 = sand.u32 %s187, 1
        %s346 = scalar_lea.sflag [#allocation6], %s345
        %s347 = sand.u32 %s187, 1
        %s348 = smul.addr %s347, 8
        %s349 = scalar_lea.vmem [#allocation12], %s348
        %p351 = scmp.eq.s32.totalorder %s32, 0
        // Predicated region
        $region61: #{tpu_custom_call.1} parent=43 // pred_check
          %p352 = pneg %p351
        $region62: #{tpu_custom_call.1} parent=43 // pred_check_branch
          %354 = sbr.rel (%p352) target = $region64
        $region63: #{tpu_custom_call.1} parent=43 // pred_region
          %v355 = vld [vmem:[%s308] sm:$0xf]
          %v356 = vld [vmem:[#allocation10] sm:$0xf]
          %v357 = vld [vmem:[#allocation10 + $0x4] sm:$0xf]
          %v358 = vld [vmem:[#allocation10 + $0x8] sm:$0xf]
          %v359 = vld [vmem:[#allocation10 + $0xc] sm:$0xf]
          %v360 = vld [vmem:[%s5] sm:$0x1]
          %v362 = vlaneseq
          %v363 = vshrl.u32 %v362, 7
          %v364 = vsub.s32 0, %v363
          %v365 = vrot.slane %v360, %v364
          %v371 = vunpack.c.l.b16 %v356
          %v372 = vunpack.c.l.b16 %v357
          %v373 = vunpack.c.l.b16 %v358
          %v374 = vunpack.c.l.b16 %v359
          %v375 = vpack.c.b16 %v372, %v371
          %v376 = vpack.c.b16 %v374, %v373
          %vm379 = vcmask 261120
          %v381 = vsel %vm379, %v355, 0
          %383 = vmatprep.subr.bf16.mxu0 0
          %384 = vmatpush1.bf16.msra.mxu0 %v375
          %385 = vmatprep.subr.bf16.mxu0 0
          %386 = vmatpush1.bf16.msra.mxu0 %v376
          %387 = vmatprep.subr.bf16.mxu0 0
          %388 = vmatpush1.bf16.msra.mxu0 0
          %389 = vmatprep.subr.bf16.mxu0 0
          %390 = vmatpush1.bf16.msra.mxu0 0
          %391 = vmatprep.subr.bf16.mxu0 0
          %392 = vmatpush1.bf16.msra.mxu0 0
          %393 = vmatprep.subr.bf16.mxu0 0
          %394 = vmatpush1.bf16.msra.mxu0 0
          %395 = vmatprep.subr.bf16.mxu0 0
          %396 = vmatpush1.bf16.msra.mxu0 0
          %397 = vmatprep.subr.bf16.mxu0 0
          %398 = vmatpush1.bf16.msra.mxu0 0
          %399 = vmatprep.subr.bf16.mxu0 0
          %400 = vmatpush1.bf16.msra.mxu0 0
          %401 = vmatprep.subr.bf16.mxu0 0
          %402 = vmatpush1.bf16.msra.mxu0 0
          %403 = vmatprep.subr.bf16.mxu0 0
          %404 = vmatpush1.bf16.msra.mxu0 0
          %405 = vmatprep.subr.bf16.mxu0 0
          %406 = vmatpush1.bf16.msra.mxu0 0
          %407 = vmatprep.subr.bf16.mxu0 0
          %408 = vmatpush1.bf16.msra.mxu0 0
          %409 = vmatprep.subr.bf16.mxu0 0
          %410 = vmatpush1.bf16.msra.mxu0 0
          %411 = vmatprep.subr.bf16.mxu0 0
          %412 = vmatpush1.bf16.msra.mxu0 0
          %413 = vmatprep.subr.bf16.mxu0 0
          %414 = vmatpush1.bf16.msra.mxu0 0
          %415 = vmatprep.mubr.bf16.mxu0 0
          %416 = vmatmul.mubr.bf16.gmra.mrb[0].mxu0 %v381
          %v417 = vpop.f32.mrb[0].mxu0
          %v418 = vadd.f32 %v365, %v417
          %v419 = vpop.f32.mrb[0].mxu0
          %v420 = vpop.f32.mrb[0].mxu0
          %v421 = vpop.f32.mrb[0].mxu0
          %422 = vdwg.mxu0
          %v423 = vpack.c.bf16 %v418, %v418
          %vm424 = vcmask 257024
          %425 = vst.msk [vmem:[#allocation2] sm:$0xf] %vm424, %v423
          %v427 = vunpack.c.l.b16 %v423
          %v428 = vpack.c.b16 %v427, %v427
          %429 = vrot.lane.b32.xlu0 %v428, 96
          %v430 = vpop.permute.xlu0 %429
          %432 = vst.msk [vmem:[#allocation3] sm:$0xf] %vm424, %v430
        $region64: #{tpu_custom_call.1} parent=43 // pred_fallthru
          _
        %v433 = vld [vmem:[%s299] sm:$0xf]
        %v434 = vld [vmem:[#allocation9] sm:$0xf]
        %v435 = vld [vmem:[#allocation9 + $0x4] sm:$0xf]
        %v436 = vld [vmem:[#allocation9 + $0x8] sm:$0xf]
        %v437 = vld [vmem:[#allocation9 + $0xc] sm:$0xf]
        %v438 = vld [vmem:[%s4] sm:$0x1]
        %v440 = vlaneseq
        %v441 = vshrl.u32 %v440, 7
        %v442 = vsub.s32 0, %v441
        %v443 = vrot.slane %v438, %v442
        %v449 = vunpack.c.l.b16 %v434
        %v450 = vunpack.c.l.b16 %v435
        %v451 = vunpack.c.l.b16 %v436
        %v452 = vunpack.c.l.b16 %v437
        %v453 = vpack.c.b16 %v450, %v449
        %v454 = vpack.c.b16 %v452, %v451
        %vm457 = vcmask 261120
        %v459 = vsel %vm457, %v433, 0
        %461 = vmatprep.subr.bf16.mxu0 0
        %462 = vmatpush1.bf16.msra.mxu0 %v453
        %463 = vmatprep.subr.bf16.mxu0 0
        %464 = vmatpush1.bf16.msra.mxu0 %v454
        %465 = vmatprep.subr.bf16.mxu0 0
        %466 = vmatpush1.bf16.msra.mxu0 0
        %467 = vmatprep.subr.bf16.mxu0 0
        %468 = vmatpush1.bf16.msra.mxu0 0
        %469 = vmatprep.subr.bf16.mxu0 0
        %470 = vmatpush1.bf16.msra.mxu0 0
        %471 = vmatprep.subr.bf16.mxu0 0
        %472 = vmatpush1.bf16.msra.mxu0 0
        %473 = vmatprep.subr.bf16.mxu0 0
        %474 = vmatpush1.bf16.msra.mxu0 0
        %475 = vmatprep.subr.bf16.mxu0 0
        %476 = vmatpush1.bf16.msra.mxu0 0
        %477 = vmatprep.subr.bf16.mxu0 0
        %478 = vmatpush1.bf16.msra.mxu0 0
        %479 = vmatprep.subr.bf16.mxu0 0
        %480 = vmatpush1.bf16.msra.mxu0 0
        %481 = vmatprep.subr.bf16.mxu0 0
        %482 = vmatpush1.bf16.msra.mxu0 0
        %483 = vmatprep.subr.bf16.mxu0 0
        %484 = vmatpush1.bf16.msra.mxu0 0
        %485 = vmatprep.subr.bf16.mxu0 0
        %486 = vmatpush1.bf16.msra.mxu0 0
        %487 = vmatprep.subr.bf16.mxu0 0
        %488 = vmatpush1.bf16.msra.mxu0 0
        %489 = vmatprep.subr.bf16.mxu0 0
        %490 = vmatpush1.bf16.msra.mxu0 0
        %491 = vmatprep.subr.bf16.mxu0 0
        %492 = vmatpush1.bf16.msra.mxu0 0
        %493 = vmatprep.mubr.bf16.mxu0 0
        %494 = vmatmul.mubr.bf16.gmra.mrb[0].mxu0 %v459
        %v495 = vpop.f32.mrb[0].mxu0
        %v496 = vadd.f32 %v443, %v495
        %v497 = vpop.f32.mrb[0].mxu0
        %v498 = vpop.f32.mrb[0].mxu0
        %v499 = vpop.f32.mrb[0].mxu0
        %500 = vdwg.mxu0
        %v501 = vpack.c.bf16 %v496, %v496
        %v502 = vld [vmem:[#allocation2] sm:$0xf]
        %v504 = vsel %vm457, %v501, 0
        %v507 = vsel %vm457, %v502, 0
        %509 = vmatprep.subr.bf16.mxu0 0
        %510 = vmatpush1.bf16.xpose.msra.mxu0 %v507
        %511 = vmatprep.subr.bf16.mxu0 0
        %512 = vmatpush1.bf16.xpose.msra.mxu0 0
        %513 = vmatprep.subr.bf16.mxu0 0
        %514 = vmatpush1.bf16.xpose.msra.mxu0 0
        %515 = vmatprep.subr.bf16.mxu0 0
        %516 = vmatpush1.bf16.xpose.msra.mxu0 0
        %517 = vmatprep.subr.bf16.mxu0 0
        %518 = vmatpush1.bf16.xpose.msra.mxu0 0
        %519 = vmatprep.subr.bf16.mxu0 0
        %520 = vmatpush1.bf16.xpose.msra.mxu0 0
        %521 = vmatprep.subr.bf16.mxu0 0
        %522 = vmatpush1.bf16.xpose.msra.mxu0 0
        %523 = vmatprep.subr.bf16.mxu0 0
        %524 = vmatpush1.bf16.xpose.msra.mxu0 0
        %525 = vmatprep.subr.bf16.mxu0 0
        %526 = vmatpush1.bf16.xpose.msra.mxu0 0
        %527 = vmatprep.subr.bf16.mxu0 0
        %528 = vmatpush1.bf16.xpose.msra.mxu0 0
        %529 = vmatprep.subr.bf16.mxu0 0
        %530 = vmatpush1.bf16.xpose.msra.mxu0 0
        %531 = vmatprep.subr.bf16.mxu0 0
        %532 = vmatpush1.bf16.xpose.msra.mxu0 0
        %533 = vmatprep.subr.bf16.mxu0 0
        %534 = vmatpush1.bf16.xpose.msra.mxu0 0
        %535 = vmatprep.subr.bf16.mxu0 0
        %536 = vmatpush1.bf16.xpose.msra.mxu0 0
        %537 = vmatprep.subr.bf16.mxu0 0
        %538 = vmatpush1.bf16.xpose.msra.mxu0 0
        %539 = vmatprep.subr.bf16.mxu0 0
        %540 = vmatpush1.bf16.xpose.msra.mxu0 0
        %541 = vmatprep.mubr.bf16.mxu0 0
        %542 = vmatmul.mubr.bf16.gmra.mrb[0].mxu0 %v504
        %v543 = vpop.f32.mrb[0].mxu0
        %v544 = vadd.f32 0.0, %v543
        %v545 = vpop.f32.mrb[0].mxu0
        %v546 = vpop.f32.mrb[0].mxu0
        %v547 = vpop.f32.mrb[0].mxu0
        %548 = vdwg.mxu0
        %vm549 = vcmask 64512
        %v550 = vsel %vm549, %v544, -inf
        %551 = vmax.xlane.f32.xlu0 %v550
        %v552 = vpop.xlane.xlu0 %551
        %v553 = vsub.f32 %v544, %v552
        %v554 = vmul.f32 %v553, 1.442695
        %v555 = vpow.pop %v554
        %v556 = vsel %vm549, %v555, 0.0
        %557 = vadd.xlane.f32.xlu0 %v556
        %v558 = vpop.xlane.xlu0 %557
        %v559 = vrcp.pop %v558
        %v560 = vmul.f32 %v555, %v559
        %v561 = vpack.c.bf16 %v560, %v560
        %v562 = vld [vmem:[#allocation3] sm:$0xf]
        %v564 = vsel %vm549, %v561, 0
        %vm566 = vcmask 1043456
        %v568 = vsel %vm566, %v562, 0
        %570 = vmatprep.subr.bf16.mxu0 0
        %571 = vmatpush1.bf16.msra.mxu0 %v568
        %572 = vmatprep.subr.bf16.mxu0 0
        %573 = vmatpush1.bf16.msra.mxu0 0
        %574 = vmatprep.subr.bf16.mxu0 0
        %575 = vmatpush1.bf16.msra.mxu0 0
        %576 = vmatprep.subr.bf16.mxu0 0
        %577 = vmatpush1.bf16.msra.mxu0 0
        %578 = vmatprep.subr.bf16.mxu0 0
        %579 = vmatpush1.bf16.msra.mxu0 0
        %580 = vmatprep.subr.bf16.mxu0 0
        %581 = vmatpush1.bf16.msra.mxu0 0
        %582 = vmatprep.subr.bf16.mxu0 0
        %583 = vmatpush1.bf16.msra.mxu0 0
        %584 = vmatprep.subr.bf16.mxu0 0
        %585 = vmatpush1.bf16.msra.mxu0 0
        %586 = vmatprep.subr.bf16.mxu0 0
        %587 = vmatpush1.bf16.msra.mxu0 0
        %588 = vmatprep.subr.bf16.mxu0 0
        %589 = vmatpush1.bf16.msra.mxu0 0
        %590 = vmatprep.subr.bf16.mxu0 0
        %591 = vmatpush1.bf16.msra.mxu0 0
        %592 = vmatprep.subr.bf16.mxu0 0
        %593 = vmatpush1.bf16.msra.mxu0 0
        %594 = vmatprep.subr.bf16.mxu0 0
        %595 = vmatpush1.bf16.msra.mxu0 0
        %596 = vmatprep.subr.bf16.mxu0 0
        %597 = vmatpush1.bf16.msra.mxu0 0
        %598 = vmatprep.subr.bf16.mxu0 0
        %599 = vmatpush1.bf16.msra.mxu0 0
        %600 = vmatprep.subr.bf16.mxu0 0
        %601 = vmatpush1.bf16.msra.mxu0 0
        %602 = vmatprep.mubr.bf16.mxu0 0
        %603 = vmatmul.mubr.bf16.gmra.mrb[0].mxu0 %v564
        %v604 = vpop.f32.mrb[0].mxu0
        %v605 = vadd.f32 0.0, %v604
        %v606 = vpop.f32.mrb[0].mxu0
        %v607 = vpop.f32.mrb[0].mxu0
        %v608 = vpop.f32.mrb[0].mxu0
        %609 = vdwg.mxu0
        %610 = vst.msk [vmem:[%s349] sm:$0xff] %vm457, %v605
        %s611 = sand.u32 %s187, 1
        %s612 = scalar_lea.sflag [#allocation6], %s611
        %s613 = sand.u32 %s187, 1
        %s614 = smul.addr %s613, 8
        %s615 = scalar_lea.vmem [#allocation12], %s614
        // Predicated region
        $region65: #{tpu_custom_call.1} parent=43 // pred_check
          %p616 = pneg %p197
        $region66: #{tpu_custom_call.1} parent=43 // pred_check_branch
          %618 = sbr.rel (%p616) target = $region68
        $region67: #{tpu_custom_call.1} parent=43 // pred_region
          %s620 = ssub.s32 128, 128
          %621 = vsyncadd %s612, %s620
          %s622 = sadd.s32 %s32, %s31
          %s623 = smul.addr %s622, 128
          %s624 = scalar_lea.hbm %s6, %s623
          %s626 = sshll.u32 %s615, 4
          %s627 = int_to_ptr.vmem [resolvable:$true] %s626
          %629 = dma.vmem_to_hbm [thread:$0]  %s627, 128, %s624, %s612
        $region68: #{tpu_custom_call.1} parent=43 // pred_fallthru
          _
      $region44: #{tpu_custom_call.1} parent=5 // pred_fallthru
        _
      %p630 = scmp.le.s32.totalorder 2, %s22
      // Predicated region
      $region69: #{tpu_custom_call.1} parent=5 // pred_check
        %p631 = pneg %p630
      $region70: #{tpu_custom_call.1} parent=5 // pred_check_branch
        %633 = sbr.rel (%p631) target = $region72
      $region71: #{tpu_custom_call.1} parent=5 // pred_region
        %s634 = ssub.s32 %s22, 2
        // Predicated region
        $region73: #{tpu_custom_call.1} parent=71 // pred_check
          %p635 = pneg %p203
        $region74: #{tpu_custom_call.1} parent=71 // pred_check_branch
          %637 = sbr.rel (%p635) target = $region76
        $region75: #{tpu_custom_call.1} parent=71 // pred_region
          %s638 = sand.u32 %s188, 1
          %s639 = scalar_lea.sflag [#allocation6], %s638
          %s640 = sand.u32 %s188, 1
          %s641 = smul.addr %s640, 8
          %s642 = scalar_lea.vmem [#allocation12], %s641
          %643 = dma.done %s639, 128
        $region76: #{tpu_custom_call.1} parent=71 // pred_fallthru
          _
      $region72: #{tpu_custom_call.1} parent=5 // pred_fallthru
        _
    $region6: #{tpu_custom_call.1} parent=1 // loop_footer
      %s26 = sadd.s32 1, %s22
    $region7: #{tpu_custom_call.1} parent=1 // loop_footer_branch
      %21 = sbr.rel target = $region3
    $region8: #{tpu_custom_call.1} parent=1 // loop_exit
      _
    %644 = vsyncpa [#allocation5], 1
    %s645 = scalar_lea.sflag [#allocation5], 1
    %646 = vsyncpa %s645, 1
    %647 = vsyncpa [#allocation8], 1
    %s648 = scalar_lea.sflag [#allocation8], 1
    %649 = vsyncpa %s648, 1
    %650 = vsyncpa [#allocation11], 1
    %651 = vsyncpa [#allocation6], 1
    %s652 = scalar_lea.sflag [#allocation6], 1
    %653 = vsyncpa %s652, 1

</llo_original>
